<compile_context>
chip_gen: v7x
topology: tpu7x:2x2x1
jax: 0.10.0
libtpu: 0.0.40
codegen_flags: <defaults>
</compile_context>

<pallas_src>
import functools

import jax
import jax.numpy as jnp
from jax.experimental import pallas as pl
from jax.experimental.pallas import tpu as pltpu


def _leaky_relu(x, slope=0.1):
    # nn.LeakyReLU(0.1) in the reference module.
    return jnp.where(x >= 0, x, slope * x)


def _round_up(n, m):
    return ((n + m - 1) // m) * m


def mlp_kernel(x_ref, w1_ref, b1_ref, w2_ref, b2_ref, w3_ref, b3_ref, o_ref):
    # Fused 3-layer MLP on one batch tile:
    #   (x @ W1 + b1) -> leaky_relu -> (@ W2 + b2) -> leaky_relu -> (@ W3 + b3)
    # All matmuls accumulate in f32 on the MXU; leaky_relu runs in f32 on the
    # VPU (v5e has no bf16 VALUs) and activations are cast back to the weight
    # dtype before the next MXU pass.
    x = x_ref[...]
    h = jnp.dot(x, w1_ref[...], preferred_element_type=jnp.float32) + b1_ref[...]
    h = _leaky_relu(h)
    h = jnp.dot(h.astype(w2_ref.dtype), w2_ref[...],
                preferred_element_type=jnp.float32) + b2_ref[...]
    h = _leaky_relu(h)
    out = jnp.dot(h.astype(w3_ref.dtype), w3_ref[...],
                  preferred_element_type=jnp.float32) + b3_ref[...]
    o_ref[...] = out.astype(o_ref.dtype)


@functools.partial(jax.jit, static_argnames=("block_b", "compute_dtype"))
def large_nn_forward(x, w1, b1, w2, b2, w3, b3, *, block_b=512, compute_dtype=None):
    orig_dtype = x.dtype
    B, d_in = x.shape
    h1 = w1.shape[1]
    h2 = w2.shape[1]
    d_out = w3.shape[1]

    if compute_dtype is None:
        compute_dtype = orig_dtype
    compute_dtype = jnp.dtype(compute_dtype)

    # Lane padding: every feature dim -> multiple of 128 so vregs / MXU columns
    # are fully used and the output store is an unmasked, lane-dense vst.
    d_in_p = _round_up(d_in, 128)
    h1_p = _round_up(h1, 128)
    h2_p = _round_up(h2, 128)
    d_out_p = _round_up(d_out, 128)

    # Sublane alignment: 8 rows for 4-byte dtypes, 16 for bf16/fp16.
    sub = 8 if compute_dtype.itemsize >= 4 else 16

    # Batch tiling: big tiles amortize per-grid-step overhead; when the batch
    # is large enough, keep >=2 blocks so the "parallel" axis can be sharded
    # across v7x's two TensorCores.
    b_aligned = _round_up(B, sub)
    bb = min(block_b, b_aligned)
    if b_aligned // bb < 2 and b_aligned >= 2 * sub:
        bb = _round_up(pl.cdiv(b_aligned, 2), sub)
    bb = _round_up(bb, sub)
    B_p = _round_up(B, bb)

    # Zero-pad operands once in the wrapper (padded rows/cols contribute 0, so
    # the valid output region is exact; padding is stripped after the call).
    x_p = jnp.pad(x, ((0, B_p - B), (0, d_in_p - d_in))).astype(compute_dtype)
    w1_p = jnp.pad(w1, ((0, d_in_p - d_in), (0, h1_p - h1))).astype(compute_dtype)
    w2_p = jnp.pad(w2, ((0, h1_p - h1), (0, h2_p - h2))).astype(compute_dtype)
    w3_p = jnp.pad(w3, ((0, h2_p - h2), (0, d_out_p - d_out))).astype(compute_dtype)
    # Biases stay f32: they are added onto the f32 MXU accumulator.
    b1_p = jnp.pad(b1, ((0, 0), (0, h1_p - h1))).astype(jnp.float32)
    b2_p = jnp.pad(b2, ((0, 0), (0, h2_p - h2))).astype(jnp.float32)
    b3_p = jnp.pad(b3, ((0, 0), (0, d_out_p - d_out))).astype(jnp.float32)

    grid = (B_p // bb,)

    flops = 2 * B_p * (d_in_p * h1_p + h1_p * h2_p + h2_p * d_out_p)
    bytes_accessed = int(
        x_p.size * x_p.dtype.itemsize
        + sum(a.size * a.dtype.itemsize
              for a in (w1_p, b1_p, w2_p, b2_p, w3_p, b3_p))
        + B_p * d_out_p * jnp.dtype(orig_dtype).itemsize
    )

    out_p = pl.pallas_call(
        mlp_kernel,
        out_shape=jax.ShapeDtypeStruct((B_p, d_out_p), orig_dtype),
        grid_spec=pltpu.PrefetchScalarGridSpec(
            num_scalar_prefetch=0,
            grid=grid,
            in_specs=[
                pl.BlockSpec((bb, d_in_p), lambda i: (i, 0)),     # x tile (streams)
                # Weights/biases have constant index_maps; Pallas skips the
                # re-fetch when the block index is unchanged, so they are
                # DMA'd once per call and stay resident in VMEM (~400 KB
                # padded — negligible against any generation's VMEM).
                pl.BlockSpec((d_in_p, h1_p), lambda i: (0, 0)),   # W1
                pl.BlockSpec((1, h1_p), lambda i: (0, 0)),        # b1
                pl.BlockSpec((h1_p, h2_p), lambda i: (0, 0)),     # W2
                pl.BlockSpec((1, h2_p), lambda i: (0, 0)),        # b2
                pl.BlockSpec((h2_p, d_out_p), lambda i: (0, 0)),  # W3
                pl.BlockSpec((1, d_out_p), lambda i: (0, 0)),     # b3
            ],
            out_specs=pl.BlockSpec((bb, d_out_p), lambda i: (i, 0)),
        ),
        compiler_params=pltpu.CompilerParams(
            dimension_semantics=("parallel",),
        ),
        cost_estimate=pl.CostEstimate(
            flops=flops, transcendentals=0, bytes_accessed=bytes_accessed),
    )(x_p, w1_p, b1_p, w2_p, b2_p, w3_p, b3_p)

    # Strip batch / feature padding.
    return out_p[:B, :d_out]


def init_linear(key, fan_in, fan_out, dtype=jnp.float32):
    """Deterministic init mimicking torch.nn.Linear's default U(-1/sqrt(in), 1/sqrt(in)).
    Returns W in [in, out] layout and b in [1, out]."""
    k_w, k_b = jax.random.split(key)
    bound = 1.0 / jnp.sqrt(fan_in)
    w = jax.random.uniform(k_w, (fan_in, fan_out), dtype, -bound, bound)
    b = jax.random.uniform(k_b, (1, fan_out), dtype, -bound, bound)
    return w, b


def reference_forward(x, w1, b1, w2, b2, w3, b3):
    h = _leaky_relu(x @ w1 + b1)
    h = _leaky_relu(h @ w2 + b2)
    return h @ w3 + b3


if __name__ == "__main__":
    # config: input_dim=16, hidden1=32, hidden2=32, output_dim=8, batch=8
    config = {"input_dim": 16, "hidden1": 32, "hidden2": 32, "output_dim": 8}
    batch = 8

    key = jax.random.PRNGKey(0)
    k_x, k1, k2, k3 = jax.random.split(key, 4)

    x = jax.random.normal(k_x, (batch, config["input_dim"]), jnp.float32)
    w1, b1 = init_linear(k1, config["input_dim"], config["hidden1"])
    w2, b2 = init_linear(k2, config["hidden1"], config["hidden2"])
    w3, b3 = init_linear(k3, config["hidden2"], config["output_dim"])

    ref = reference_forward(x, w1, b1, w2, b2, w3, b3)

    # f32 path (exact vs reference).
    out = large_nn_forward(x, w1, b1, w2, b2, w3, b3)
    out = jax.block_until_ready(out)
    assert out.shape == (batch, config["output_dim"])
    assert jnp.allclose(out, ref, atol=1e-5, rtol=1e-5)

    # bf16 MXU path (v6e/v7x fast path; f32 accumulation) — loose tolerance.
    out_bf16 = large_nn_forward(x, w1, b1, w2, b2, w3, b3,
                                compute_dtype=jnp.bfloat16)
    out_bf16 = jax.block_until_ready(out_bf16)
    assert out_bf16.shape == (batch, config["output_dim"])
    assert jnp.allclose(out_bf16, ref, atol=5e-2, rtol=5e-2)

    print("KERNEL_OK")
</pallas_src>

<mosaic_0001>
module attributes {stable_mosaic.version = 11 : i64} {
  func.func @mlp_kernel(%arg0: i32, %arg1: memref<8x128xf32, #tpu.memory_space<vmem>>, %arg2: memref<128x128xf32, #tpu.memory_space<vmem>>, %arg3: memref<1x128xf32, #tpu.memory_space<vmem>>, %arg4: memref<128x128xf32, #tpu.memory_space<vmem>>, %arg5: memref<1x128xf32, #tpu.memory_space<vmem>>, %arg6: memref<128x128xf32, #tpu.memory_space<vmem>>, %arg7: memref<1x128xf32, #tpu.memory_space<vmem>>, %arg8: memref<8x128xf32, #tpu.memory_space<vmem>>) attributes {dimension_semantics = [#tpu.dimension_semantics<parallel>], iteration_bounds = array<i64: 1>, scalar_prefetch = 0 : i64, scratch_operands = 0 : i64, tpu.core_type = #tpu.core_type<tc>, window_params = [{transform_indices = @transform_0, window_bounds = array<i64: 8, 128>}, {pipeline_mode = #tpu.pipeline_mode<synchronous>, transform_indices = @transform_1, window_bounds = array<i64: 128, 128>}, {pipeline_mode = #tpu.pipeline_mode<synchronous>, transform_indices = @transform_2, window_bounds = array<i64: 1, 128>}, {pipeline_mode = #tpu.pipeline_mode<synchronous>, transform_indices = @transform_3, window_bounds = array<i64: 128, 128>}, {pipeline_mode = #tpu.pipeline_mode<synchronous>, transform_indices = @transform_4, window_bounds = array<i64: 1, 128>}, {pipeline_mode = #tpu.pipeline_mode<synchronous>, transform_indices = @transform_5, window_bounds = array<i64: 128, 128>}, {pipeline_mode = #tpu.pipeline_mode<synchronous>, transform_indices = @transform_6, window_bounds = array<i64: 1, 128>}, {transform_indices = @transform_7, window_bounds = array<i64: 8, 128>}]} {
    %c0 = arith.constant 0 : index
    %c0_0 = arith.constant 0 : index
    %0 = vector.load %arg1[%c0, %c0_0] : memref<8x128xf32, #tpu.memory_space<vmem>>, vector<8x128xf32>
    %c0_1 = arith.constant 0 : index
    %c0_2 = arith.constant 0 : index
    %1 = vector.load %arg2[%c0_1, %c0_2] : memref<128x128xf32, #tpu.memory_space<vmem>>, vector<128x128xf32>
    %cst = arith.constant dense<0.000000e+00> : vector<8x128xf32>
    %2 = tpu.matmul %0, %1, %cst {dimension_numbers = #tpu.dot_dimension_numbers<[1], [0], [0], [1], [0, 0, 1, 1], [], []>} : vector<8x128xf32>, vector<128x128xf32>, vector<8x128xf32> -> vector<8x128xf32>
    %c0_3 = arith.constant 0 : index
    %c0_4 = arith.constant 0 : index
    %3 = vector.load %arg3[%c0_3, %c0_4] : memref<1x128xf32, #tpu.memory_space<vmem>>, vector<1x128xf32>
    %4 = vector.broadcast %3 : vector<1x128xf32> to vector<8x128xf32>
    %5 = arith.addf %2, %4 : vector<8x128xf32>
    %cst_5 = arith.constant 0.000000e+00 : f32
    %6 = vector.broadcast %cst_5 : f32 to vector<8x128xf32>
    %7 = arith.cmpf oge, %5, %6 : vector<8x128xf32>
    %cst_6 = arith.constant 1.000000e-01 : f32
    %8 = vector.broadcast %cst_6 : f32 to vector<8x128xf32>
    %9 = arith.mulf %8, %5 : vector<8x128xf32>
    %10 = arith.select %7, %5, %9 : vector<8x128xi1>, vector<8x128xf32>
    %c0_7 = arith.constant 0 : index
    %c0_8 = arith.constant 0 : index
    %11 = vector.load %arg4[%c0_7, %c0_8] : memref<128x128xf32, #tpu.memory_space<vmem>>, vector<128x128xf32>
    %cst_9 = arith.constant dense<0.000000e+00> : vector<8x128xf32>
    %12 = tpu.matmul %10, %11, %cst_9 {dimension_numbers = #tpu.dot_dimension_numbers<[1], [0], [0], [1], [0, 0, 1, 1], [], []>} : vector<8x128xf32>, vector<128x128xf32>, vector<8x128xf32> -> vector<8x128xf32>
    %c0_10 = arith.constant 0 : index
    %c0_11 = arith.constant 0 : index
    %13 = vector.load %arg5[%c0_10, %c0_11] : memref<1x128xf32, #tpu.memory_space<vmem>>, vector<1x128xf32>
    %14 = vector.broadcast %13 : vector<1x128xf32> to vector<8x128xf32>
    %15 = arith.addf %12, %14 : vector<8x128xf32>
    %cst_12 = arith.constant 0.000000e+00 : f32
    %16 = vector.broadcast %cst_12 : f32 to vector<8x128xf32>
    %17 = arith.cmpf oge, %15, %16 : vector<8x128xf32>
    %cst_13 = arith.constant 1.000000e-01 : f32
    %18 = vector.broadcast %cst_13 : f32 to vector<8x128xf32>
    %19 = arith.mulf %18, %15 : vector<8x128xf32>
    %20 = arith.select %17, %15, %19 : vector<8x128xi1>, vector<8x128xf32>
    %c0_14 = arith.constant 0 : index
    %c0_15 = arith.constant 0 : index
    %21 = vector.load %arg6[%c0_14, %c0_15] : memref<128x128xf32, #tpu.memory_space<vmem>>, vector<128x128xf32>
    %cst_16 = arith.constant dense<0.000000e+00> : vector<8x128xf32>
    %22 = tpu.matmul %20, %21, %cst_16 {dimension_numbers = #tpu.dot_dimension_numbers<[1], [0], [0], [1], [0, 0, 1, 1], [], []>} : vector<8x128xf32>, vector<128x128xf32>, vector<8x128xf32> -> vector<8x128xf32>
    %c0_17 = arith.constant 0 : index
    %c0_18 = arith.constant 0 : index
    %23 = vector.load %arg7[%c0_17, %c0_18] : memref<1x128xf32, #tpu.memory_space<vmem>>, vector<1x128xf32>
    %24 = vector.broadcast %23 : vector<1x128xf32> to vector<8x128xf32>
    %25 = arith.addf %22, %24 : vector<8x128xf32>
    %c0_19 = arith.constant 0 : index
    %c0_20 = arith.constant 0 : index
    %26 = vector.load %arg8[%c0_19, %c0_20] : memref<8x128xf32, #tpu.memory_space<vmem>>, vector<8x128xf32>
    tpu.vector_store %arg8[%c0_19, %c0_20], %25 {strides = array<i32>} : memref<8x128xf32, #tpu.memory_space<vmem>>, vector<8x128xf32>,
    return
  }
  func.func @transform_0(%arg0: i32) -> (i32, i32) {
    %c0_i32 = arith.constant 0 : i32
    %c0_i32_0 = arith.constant 0 : i32
    return %arg0, %c0_i32 : i32, i32
  }
  func.func @transform_1(%arg0: i32) -> (i32, i32) {
    %c0_i32 = arith.constant 0 : i32
    %c0_i32_0 = arith.constant 0 : i32
    %c0_i32_1 = arith.constant 0 : i32
    return %c0_i32, %c0_i32_0 : i32, i32
  }
  func.func @transform_2(%arg0: i32) -> (i32, i32) {
    %c0_i32 = arith.constant 0 : i32
    %c0_i32_0 = arith.constant 0 : i32
    %c0_i32_1 = arith.constant 0 : i32
    return %c0_i32, %c0_i32_0 : i32, i32
  }
  func.func @transform_3(%arg0: i32) -> (i32, i32) {
    %c0_i32 = arith.constant 0 : i32
    %c0_i32_0 = arith.constant 0 : i32
    %c0_i32_1 = arith.constant 0 : i32
    return %c0_i32, %c0_i32_0 : i32, i32
  }
  func.func @transform_4(%arg0: i32) -> (i32, i32) {
    %c0_i32 = arith.constant 0 : i32
    %c0_i32_0 = arith.constant 0 : i32
    %c0_i32_1 = arith.constant 0 : i32
    return %c0_i32, %c0_i32_0 : i32, i32
  }
  func.func @transform_5(%arg0: i32) -> (i32, i32) {
    %c0_i32 = arith.constant 0 : i32
    %c0_i32_0 = arith.constant 0 : i32
    %c0_i32_1 = arith.constant 0 : i32
    return %c0_i32, %c0_i32_0 : i32, i32
  }
  func.func @transform_6(%arg0: i32) -> (i32, i32) {
    %c0_i32 = arith.constant 0 : i32
    %c0_i32_0 = arith.constant 0 : i32
    %c0_i32_1 = arith.constant 0 : i32
    return %c0_i32, %c0_i32_0 : i32, i32
  }
  func.func @transform_7(%arg0: i32) -> (i32, i32) {
    %c0_i32 = arith.constant 0 : i32
    %c0_i32_0 = arith.constant 0 : i32
    return %arg0, %c0_i32 : i32, i32
  }
}

</mosaic_0001>

<llo_original>
// kernel: large_nn_forward.1
$region0: #{large_nn_forward.1}
  #allocation0 [shape = 'u32[]', space=smem, size = 0x4, offset = 0x4, fixed_abs, tag = 'smem constant byte address 0x4 - core index']
  #allocation1 [shape = 'u32[144,128]{1,0:T(1,128)}', space=vmem, size = 0x12000, scoped, tag = 'internal scratch']
  %s0 = inlined_call_operand.vmem [shape: f32[8,128], index: 0, kind: input, shape index: {}]
  %s1 = inlined_call_operand.vmem [shape: f32[128,128], index: 1, kind: input, shape index: {}]
  %s2 = inlined_call_operand.vmem [shape: f32[1,128], index: 2, kind: input, shape index: {}]
  %s3 = inlined_call_operand.vmem [shape: f32[128,128], index: 3, kind: input, shape index: {}]
  %s4 = inlined_call_operand.vmem [shape: f32[1,128], index: 4, kind: input, shape index: {}]
  %s5 = inlined_call_operand.vmem [shape: f32[128,128], index: 5, kind: input, shape index: {}]
  %s6 = inlined_call_operand.vmem [shape: f32[1,128], index: 6, kind: input, shape index: {}]
  %s7 = inlined_call_operand.hbm [shape: f32[8,128], index: 7, kind: output, shape index: {}]
  %s8 = sld [smem:[#allocation0]]
  $region38: #{large_nn_forward.1} parent=0
    _
  %s10 = ssub.s32 1, %s8
  %s11 = scalar_select 0, %s10, %s8
  $region1: #{large_nn_forward.1} parent=0
    #allocation2 [shape = 'u8[4096]{0}', space=vmem, size = 0x1000, scoped, tag = 'output window, operand 0, single buffered']
    #allocation3 [shape = 's32[1]{0}', space=sflag, size = 0x4, scoped, tag = 'scoped memory for large_nn_forward.1']
    %12 = vsyncpa [#allocation3], 0
    // Predicated region
    $region2: #{large_nn_forward.1} parent=1 // pred_check
      _
    $region3: #{large_nn_forward.1} parent=1 // pred_check_branch
      %14 = sbr.rel (0) target = $region5
    $region4: #{large_nn_forward.1} parent=1 // pred_region
      _
    $region5: #{large_nn_forward.1} parent=1 // pred_fallthru
      _
    // Predicated region
    $region6: #{large_nn_forward.1} parent=1 // pred_check
      _
    $region7: #{large_nn_forward.1} parent=1 // pred_check_branch
      %16 = sbr.rel (0) target = $region9
    $region8: #{large_nn_forward.1} parent=1 // pred_region
      _
    $region9: #{large_nn_forward.1} parent=1 // pred_fallthru
      _
    // Predicated region
    $region10: #{large_nn_forward.1} parent=1 // pred_check
      _
    $region11: #{large_nn_forward.1} parent=1 // pred_check_branch
      %18 = sbr.rel (0) target = $region13
    $region12: #{large_nn_forward.1} parent=1 // pred_region
      _
    $region13: #{large_nn_forward.1} parent=1 // pred_fallthru
      _
    // Predicated region
    $region14: #{large_nn_forward.1} parent=1 // pred_check
      _
    $region15: #{large_nn_forward.1} parent=1 // pred_check_branch
      %20 = sbr.rel (0) target = $region17
    $region16: #{large_nn_forward.1} parent=1 // pred_region
      _
    $region17: #{large_nn_forward.1} parent=1 // pred_fallthru
      _
    // Predicated region
    $region18: #{large_nn_forward.1} parent=1 // pred_check
      _
    $region19: #{large_nn_forward.1} parent=1 // pred_check_branch
      %22 = sbr.rel (0) target = $region21
    $region20: #{large_nn_forward.1} parent=1 // pred_region
      _
    $region21: #{large_nn_forward.1} parent=1 // pred_fallthru
      _
    // Predicated region
    $region22: #{large_nn_forward.1} parent=1 // pred_check
      _
    $region23: #{large_nn_forward.1} parent=1 // pred_check_branch
      %24 = sbr.rel (0) target = $region25
    $region24: #{large_nn_forward.1} parent=1 // pred_region
      _
    $region25: #{large_nn_forward.1} parent=1 // pred_fallthru
      _
    // Predicated region
    $region26: #{large_nn_forward.1} parent=1 // pred_check
      _
    $region27: #{large_nn_forward.1} parent=1 // pred_check_branch
      %26 = sbr.rel (0) target = $region29
    $region28: #{large_nn_forward.1} parent=1 // pred_region
      _
    $region29: #{large_nn_forward.1} parent=1 // pred_fallthru
      _
    %v27 = vld [vmem:[%s0] sm:$0xff]
    %v28 = vld [vmem:[%s1] sm:$0xff]
    %v29 = vld [vmem:[%s1 + $0x8] sm:$0xff]
    %v30 = vld [vmem:[%s1 + $0x10] sm:$0xff]
    %v31 = vld [vmem:[%s1 + $0x18] sm:$0xff]
    %v32 = vld [vmem:[%s1 + $0x20] sm:$0xff]
    %v33 = vld [vmem:[%s1 + $0x28] sm:$0xff]
    %v34 = vld [vmem:[%s1 + $0x30] sm:$0xff]
    %v35 = vld [vmem:[%s1 + $0x38] sm:$0xff]
    %v36 = vld [vmem:[%s1 + $0x40] sm:$0xff]
    %v37 = vld [vmem:[%s1 + $0x48] sm:$0xff]
    %v38 = vld [vmem:[%s1 + $0x50] sm:$0xff]
    %v39 = vld [vmem:[%s1 + $0x58] sm:$0xff]
    %v40 = vld [vmem:[%s1 + $0x60] sm:$0xff]
    %v41 = vld [vmem:[%s1 + $0x68] sm:$0xff]
    %v42 = vld [vmem:[%s1 + $0x70] sm:$0xff]
    %v43 = vld [vmem:[%s1 + $0x78] sm:$0xff]
    %v44 = vld [vmem:[%s2] sm:$0x1]
    %v46 = vlaneseq
    %v47 = vshrl.u32 %v46, 7
    %v48 = vsub.s32 0, %v47
    %v49 = vrot.slane %v44, %v48
    %51 = vmatprep.subr.mxu0 0.0
    %52 = vmatpush1.msra.mxu0 %v28
    %53 = vmatprep.subr.mxu0 0.0
    %54 = vmatpush1.msra.mxu0 %v29
    %55 = vmatprep.subr.mxu0 0.0
    %56 = vmatpush1.msra.mxu0 %v30
    %57 = vmatprep.subr.mxu0 0.0
    %58 = vmatpush1.msra.mxu0 %v31
    %59 = vmatprep.subr.mxu0 0.0
    %60 = vmatpush1.msra.mxu0 %v32
    %61 = vmatprep.subr.mxu0 0.0
    %62 = vmatpush1.msra.mxu0 %v33
    %63 = vmatprep.subr.mxu0 0.0
    %64 = vmatpush1.msra.mxu0 %v34
    %65 = vmatprep.subr.mxu0 0.0
    %66 = vmatpush1.msra.mxu0 %v35
    %67 = vmatprep.subr.mxu0 0.0
    %68 = vmatpush1.msra.mxu0 %v36
    %69 = vmatprep.subr.mxu0 0.0
    %70 = vmatpush1.msra.mxu0 %v37
    %71 = vmatprep.subr.mxu0 0.0
    %72 = vmatpush1.msra.mxu0 %v38
    %73 = vmatprep.subr.mxu0 0.0
    %74 = vmatpush1.msra.mxu0 %v39
    %75 = vmatprep.subr.mxu0 0.0
    %76 = vmatpush1.msra.mxu0 %v40
    %77 = vmatprep.subr.mxu0 0.0
    %78 = vmatpush1.msra.mxu0 %v41
    %79 = vmatprep.subr.mxu0 0.0
    %80 = vmatpush1.msra.mxu0 %v42
    %81 = vmatprep.subr.mxu0 0.0
    %82 = vmatpush1.msra.mxu0 %v43
    %83 = vmatprep.subr.mxu0 0.0
    %84 = vmatpush1.msra.mxu0 0.0
    %85 = vmatprep.subr.mxu0 0.0
    %86 = vmatpush1.msra.mxu0 0.0
    %87 = vmatprep.subr.mxu0 0.0
    %88 = vmatpush1.msra.mxu0 0.0
    %89 = vmatprep.subr.mxu0 0.0
    %90 = vmatpush1.msra.mxu0 0.0
    %91 = vmatprep.subr.mxu0 0.0
    %92 = vmatpush1.msra.mxu0 0.0
    %93 = vmatprep.subr.mxu0 0.0
    %94 = vmatpush1.msra.mxu0 0.0
    %95 = vmatprep.subr.mxu0 0.0
    %96 = vmatpush1.msra.mxu0 0.0
    %97 = vmatprep.subr.mxu0 0.0
    %98 = vmatpush1.msra.mxu0 0.0
    %99 = vmatprep.subr.mxu0 0.0
    %100 = vmatpush1.msra.mxu0 0.0
    %101 = vmatprep.subr.mxu0 0.0
    %102 = vmatpush1.msra.mxu0 0.0
    %103 = vmatprep.subr.mxu0 0.0
    %104 = vmatpush1.msra.mxu0 0.0
    %105 = vmatprep.subr.mxu0 0.0
    %106 = vmatpush1.msra.mxu0 0.0
    %107 = vmatprep.subr.mxu0 0.0
    %108 = vmatpush1.msra.mxu0 0.0
    %109 = vmatprep.subr.mxu0 0.0
    %110 = vmatpush1.msra.mxu0 0.0
    %111 = vmatprep.subr.mxu0 0.0
    %112 = vmatpush1.msra.mxu0 0.0
    %113 = vmatprep.subr.mxu0 0.0
    %114 = vmatpush1.msra.mxu0 0.0
    %115 = vmatprep.mubr.f32.mxu0 0.0
    %116 = vmatmul.mubr.f32.gmra.mrb[0].mxu0 %v27
    %v117 = vpop.f32.mrb[0].mxu0
    %v118 = vadd.f32 %v49, %v117
    %v119 = vpop.f32.mrb[0].mxu0
    %120 = vdwg.mxu0
    %vm121 = vcmp.ge.f32.partialorder %v118, 0.0
    %v122 = vmul.f32 %v118, 0.1
    %v123 = vsel %vm121, %v118, %v122
    %v124 = vld [vmem:[%s3] sm:$0xff]
    %v125 = vld [vmem:[%s3 + $0x8] sm:$0xff]
    %v126 = vld [vmem:[%s3 + $0x10] sm:$0xff]
    %v127 = vld [vmem:[%s3 + $0x18] sm:$0xff]
    %v128 = vld [vmem:[%s3 + $0x20] sm:$0xff]
    %v129 = vld [vmem:[%s3 + $0x28] sm:$0xff]
    %v130 = vld [vmem:[%s3 + $0x30] sm:$0xff]
    %v131 = vld [vmem:[%s3 + $0x38] sm:$0xff]
    %v132 = vld [vmem:[%s3 + $0x40] sm:$0xff]
    %v133 = vld [vmem:[%s3 + $0x48] sm:$0xff]
    %v134 = vld [vmem:[%s3 + $0x50] sm:$0xff]
    %v135 = vld [vmem:[%s3 + $0x58] sm:$0xff]
    %v136 = vld [vmem:[%s3 + $0x60] sm:$0xff]
    %v137 = vld [vmem:[%s3 + $0x68] sm:$0xff]
    %v138 = vld [vmem:[%s3 + $0x70] sm:$0xff]
    %v139 = vld [vmem:[%s3 + $0x78] sm:$0xff]
    %v140 = vld [vmem:[%s4] sm:$0x1]
    %v142 = vlaneseq
    %v143 = vshrl.u32 %v142, 7
    %v144 = vsub.s32 0, %v143
    %v145 = vrot.slane %v140, %v144
    %147 = vmatprep.subr.mxu0 0.0
    %148 = vmatpush1.msra.mxu0 %v124
    %149 = vmatprep.subr.mxu0 0.0
    %150 = vmatpush1.msra.mxu0 %v125
    %151 = vmatprep.subr.mxu0 0.0
    %152 = vmatpush1.msra.mxu0 %v126
    %153 = vmatprep.subr.mxu0 0.0
    %154 = vmatpush1.msra.mxu0 %v127
    %155 = vmatprep.subr.mxu0 0.0
    %156 = vmatpush1.msra.mxu0 %v128
    %157 = vmatprep.subr.mxu0 0.0
    %158 = vmatpush1.msra.mxu0 %v129
    %159 = vmatprep.subr.mxu0 0.0
    %160 = vmatpush1.msra.mxu0 %v130
    %161 = vmatprep.subr.mxu0 0.0
    %162 = vmatpush1.msra.mxu0 %v131
    %163 = vmatprep.subr.mxu0 0.0
    %164 = vmatpush1.msra.mxu0 %v132
    %165 = vmatprep.subr.mxu0 0.0
    %166 = vmatpush1.msra.mxu0 %v133
    %167 = vmatprep.subr.mxu0 0.0
    %168 = vmatpush1.msra.mxu0 %v134
    %169 = vmatprep.subr.mxu0 0.0
    %170 = vmatpush1.msra.mxu0 %v135
    %171 = vmatprep.subr.mxu0 0.0
    %172 = vmatpush1.msra.mxu0 %v136
    %173 = vmatprep.subr.mxu0 0.0
    %174 = vmatpush1.msra.mxu0 %v137
    %175 = vmatprep.subr.mxu0 0.0
    %176 = vmatpush1.msra.mxu0 %v138
    %177 = vmatprep.subr.mxu0 0.0
    %178 = vmatpush1.msra.mxu0 %v139
    %179 = vmatprep.subr.mxu0 0.0
    %180 = vmatpush1.msra.mxu0 0.0
    %181 = vmatprep.subr.mxu0 0.0
    %182 = vmatpush1.msra.mxu0 0.0
    %183 = vmatprep.subr.mxu0 0.0
    %184 = vmatpush1.msra.mxu0 0.0
    %185 = vmatprep.subr.mxu0 0.0
    %186 = vmatpush1.msra.mxu0 0.0
    %187 = vmatprep.subr.mxu0 0.0
    %188 = vmatpush1.msra.mxu0 0.0
    %189 = vmatprep.subr.mxu0 0.0
    %190 = vmatpush1.msra.mxu0 0.0
    %191 = vmatprep.subr.mxu0 0.0
    %192 = vmatpush1.msra.mxu0 0.0
    %193 = vmatprep.subr.mxu0 0.0
    %194 = vmatpush1.msra.mxu0 0.0
    %195 = vmatprep.subr.mxu0 0.0
    %196 = vmatpush1.msra.mxu0 0.0
    %197 = vmatprep.subr.mxu0 0.0
    %198 = vmatpush1.msra.mxu0 0.0
    %199 = vmatprep.subr.mxu0 0.0
    %200 = vmatpush1.msra.mxu0 0.0
    %201 = vmatprep.subr.mxu0 0.0
    %202 = vmatpush1.msra.mxu0 0.0
    %203 = vmatprep.subr.mxu0 0.0
    %204 = vmatpush1.msra.mxu0 0.0
    %205 = vmatprep.subr.mxu0 0.0
    %206 = vmatpush1.msra.mxu0 0.0
    %207 = vmatprep.subr.mxu0 0.0
    %208 = vmatpush1.msra.mxu0 0.0
    %209 = vmatprep.subr.mxu0 0.0
    %210 = vmatpush1.msra.mxu0 0.0
    %211 = vmatprep.mubr.f32.mxu0 0.0
    %212 = vmatmul.mubr.f32.gmra.mrb[0].mxu0 %v123
    %v213 = vpop.f32.mrb[0].mxu0
    %v214 = vadd.f32 %v145, %v213
    %v215 = vpop.f32.mrb[0].mxu0
    %216 = vdwg.mxu0
    %vm217 = vcmp.ge.f32.partialorder %v214, 0.0
    %v218 = vmul.f32 %v214, 0.1
    %v219 = vsel %vm217, %v214, %v218
    %v220 = vld [vmem:[%s5] sm:$0xff]
    %v221 = vld [vmem:[%s5 + $0x8] sm:$0xff]
    %v222 = vld [vmem:[%s5 + $0x10] sm:$0xff]
    %v223 = vld [vmem:[%s5 + $0x18] sm:$0xff]
    %v224 = vld [vmem:[%s5 + $0x20] sm:$0xff]
    %v225 = vld [vmem:[%s5 + $0x28] sm:$0xff]
    %v226 = vld [vmem:[%s5 + $0x30] sm:$0xff]
    %v227 = vld [vmem:[%s5 + $0x38] sm:$0xff]
    %v228 = vld [vmem:[%s5 + $0x40] sm:$0xff]
    %v229 = vld [vmem:[%s5 + $0x48] sm:$0xff]
    %v230 = vld [vmem:[%s5 + $0x50] sm:$0xff]
    %v231 = vld [vmem:[%s5 + $0x58] sm:$0xff]
    %v232 = vld [vmem:[%s5 + $0x60] sm:$0xff]
    %v233 = vld [vmem:[%s5 + $0x68] sm:$0xff]
    %v234 = vld [vmem:[%s5 + $0x70] sm:$0xff]
    %v235 = vld [vmem:[%s5 + $0x78] sm:$0xff]
    %v236 = vld [vmem:[%s6] sm:$0x1]
    %v238 = vlaneseq
    %v239 = vshrl.u32 %v238, 7
    %v240 = vsub.s32 0, %v239
    %v241 = vrot.slane %v236, %v240
    %243 = vmatprep.subr.mxu0 0.0
    %244 = vmatpush1.msra.mxu0 %v220
    %245 = vmatprep.subr.mxu0 0.0
    %246 = vmatpush1.msra.mxu0 %v221
    %247 = vmatprep.subr.mxu0 0.0
    %248 = vmatpush1.msra.mxu0 %v222
    %249 = vmatprep.subr.mxu0 0.0
    %250 = vmatpush1.msra.mxu0 %v223
    %251 = vmatprep.subr.mxu0 0.0
    %252 = vmatpush1.msra.mxu0 %v224
    %253 = vmatprep.subr.mxu0 0.0
    %254 = vmatpush1.msra.mxu0 %v225
    %255 = vmatprep.subr.mxu0 0.0
    %256 = vmatpush1.msra.mxu0 %v226
    %257 = vmatprep.subr.mxu0 0.0
    %258 = vmatpush1.msra.mxu0 %v227
    %259 = vmatprep.subr.mxu0 0.0
    %260 = vmatpush1.msra.mxu0 %v228
    %261 = vmatprep.subr.mxu0 0.0
    %262 = vmatpush1.msra.mxu0 %v229
    %263 = vmatprep.subr.mxu0 0.0
    %264 = vmatpush1.msra.mxu0 %v230
    %265 = vmatprep.subr.mxu0 0.0
    %266 = vmatpush1.msra.mxu0 %v231
    %267 = vmatprep.subr.mxu0 0.0
    %268 = vmatpush1.msra.mxu0 %v232
    %269 = vmatprep.subr.mxu0 0.0
    %270 = vmatpush1.msra.mxu0 %v233
    %271 = vmatprep.subr.mxu0 0.0
    %272 = vmatpush1.msra.mxu0 %v234
    %273 = vmatprep.subr.mxu0 0.0
    %274 = vmatpush1.msra.mxu0 %v235
    %275 = vmatprep.subr.mxu0 0.0
    %276 = vmatpush1.msra.mxu0 0.0
    %277 = vmatprep.subr.mxu0 0.0
    %278 = vmatpush1.msra.mxu0 0.0
    %279 = vmatprep.subr.mxu0 0.0
    %280 = vmatpush1.msra.mxu0 0.0
    %281 = vmatprep.subr.mxu0 0.0
    %282 = vmatpush1.msra.mxu0 0.0
    %283 = vmatprep.subr.mxu0 0.0
    %284 = vmatpush1.msra.mxu0 0.0
    %285 = vmatprep.subr.mxu0 0.0
    %286 = vmatpush1.msra.mxu0 0.0
    %287 = vmatprep.subr.mxu0 0.0
    %288 = vmatpush1.msra.mxu0 0.0
    %289 = vmatprep.subr.mxu0 0.0
    %290 = vmatpush1.msra.mxu0 0.0
    %291 = vmatprep.subr.mxu0 0.0
    %292 = vmatpush1.msra.mxu0 0.0
    %293 = vmatprep.subr.mxu0 0.0
    %294 = vmatpush1.msra.mxu0 0.0
    %295 = vmatprep.subr.mxu0 0.0
    %296 = vmatpush1.msra.mxu0 0.0
    %297 = vmatprep.subr.mxu0 0.0
    %298 = vmatpush1.msra.mxu0 0.0
    %299 = vmatprep.subr.mxu0 0.0
    %300 = vmatpush1.msra.mxu0 0.0
    %301 = vmatprep.subr.mxu0 0.0
    %302 = vmatpush1.msra.mxu0 0.0
    %303 = vmatprep.subr.mxu0 0.0
    %304 = vmatpush1.msra.mxu0 0.0
    %305 = vmatprep.subr.mxu0 0.0
    %306 = vmatpush1.msra.mxu0 0.0
    %307 = vmatprep.mubr.f32.mxu0 0.0
    %308 = vmatmul.mubr.f32.gmra.mrb[0].mxu0 %v219
    %v309 = vpop.f32.mrb[0].mxu0
    %v310 = vadd.f32 %v241, %v309
    %v311 = vpop.f32.mrb[0].mxu0
    %312 = vdwg.mxu0
    %313 = vst [vmem:[#allocation2] sm:$0xff] %v310
    // Predicated region
    $region30: #{large_nn_forward.1} parent=1 // pred_check
      _
    $region31: #{large_nn_forward.1} parent=1 // pred_check_branch
      %315 = sbr.rel (0) target = $region33
    $region32: #{large_nn_forward.1} parent=1 // pred_region
      %s317 = ssub.s32 128, 128
      %318 = vsyncadd [#allocation3], %s317
      %s320 = sshll.u32 [#allocation2], 4
      %s321 = int_to_ptr.vmem [resolvable:$true] %s320
      %323 = dma.vmem_to_hbm [thread:$0]  %s321, 128, %s7, [#allocation3]
    $region33: #{large_nn_forward.1} parent=1 // pred_fallthru
      _
    // Predicated region
    $region34: #{large_nn_forward.1} parent=1 // pred_check
      _
    $region35: #{large_nn_forward.1} parent=1 // pred_check_branch
      %325 = sbr.rel (0) target = $region37
    $region36: #{large_nn_forward.1} parent=1 // pred_region
      %326 = dma.done [#allocation3], 128
    $region37: #{large_nn_forward.1} parent=1 // pred_fallthru
      _
    %327 = vsyncpa [#allocation3], 1

</llo_original>
